<compile_context>
chip_gen: v5e
topology: v5e:2x2
jax: 0.10.0
libtpu: 0.0.40
codegen_flags: <defaults>
</compile_context>

<pallas_src>
import math
import numpy as np
import jax
import jax.numpy as jnp
from jax.experimental import pallas as pl
from jax.experimental.pallas import tpu as pltpu

# ----------------------------- hyper-params (opt) -----------------------------
VOCAB_SIZE = 50
EMB_DIMS = 32        # opt.embedding_dims
HIDDEN_DIMS = 32     # opt.hidden_dims
DA = 16              # opt.da
R = 4                # opt.r
NUM_LAYERS = 1       # opt.num_layers (forward re-applies the same LSTM this many times)
BATCH = 2
SEQ = 8


# --------------------------- fused encoder kernel ------------------------------
def encoder_kernel(x_ref, hc_ref, w_ref, out_ref, hs_ref):
    """Fused LSTM recurrence + structured self-attention.

    x_ref  : (S*B, E)          time-major flattened embeddings (row = t*B + b)
    hc_ref : (2B, H)           rows [0:B) = h0, rows [B:2B) = c0
    w_ref  : (E+2H+da, 4H)     packed weight slab:
                                 [0:E)        = W_ih^T (E, 4H)
                                 [E:E+H)      = W_hh^T (H, 4H)
                                 [E+H:E+2H)   = S1^T   (H, da)  in lanes [0:da)
                                 [E+2H: +da)  = S2^T   (da, r)  in lanes [0:r)
    out_ref: (B*r + 2B + 1, H) packed output:
                                 [0:B*r)          = BM rows (b*r + j  ->  M_b[j])
                                 [B*r:B*r+B)      = h_T
                                 [B*r+B:B*r+2B)   = c_T
                                 [B*r+2B]         = penal (broadcast across lanes)
    hs_ref : (S*B, H)          VMEM scratch, time-major hidden-state sequence
    """
    B = hc_ref.shape[0] // 2
    Hd = hc_ref.shape[1]
    E = x_ref.shape[1]
    S = x_ref.shape[0] // B
    r, da = R, DA

    # ---- unpack the packed weight slab (single DMA) ----
    wih = w_ref[0:E, :]                              # (E, 4H)
    whh = w_ref[E:E + Hd, :]                         # (H, 4H)
    w1t = w_ref[E + Hd:E + 2 * Hd, 0:da]             # (H, da)
    w2t = w_ref[E + 2 * Hd:E + 2 * Hd + da, 0:r]     # (da, r)

    h = hc_ref[0:B, :]
    c = hc_ref[B:2 * B, :]

    # Hoisted gate-lane mask; single-tanh gates: sigmoid(x) = 0.5*tanh(0.5*x) + 0.5.
    lane = jax.lax.broadcasted_iota(jnp.int32, (B, 4 * Hd), 1)
    g_lane = (lane >= 2 * Hd) & (lane < 3 * Hd)
    half = jnp.float32(0.5)

    layer_in = x_ref[...]                            # (S*B, E) time-major
    for layer in range(NUM_LAYERS):
        # Hoisted input projection for the whole sequence (one MXU call per layer).
        gates_x = jnp.dot(layer_in, wih, preferred_element_type=jnp.float32)  # (S*B, 4H)
        for t in range(S):                           # statically unrolled
            # Keep the add syntactically adjacent to the dot so Mosaic can fold it
            # into the MXU result path (MRB in-place accumulate on v7x).
            g = gates_x[t * B:(t + 1) * B, :] + jnp.dot(
                h, whh, preferred_element_type=jnp.float32)                    # (B, 4H)
            g2 = jnp.where(g_lane, g, half * g)
            tg = jnp.tanh(g2)                        # ONE tanh on the whole gate slab
            act = jnp.where(g_lane, tg, half * tg + half)
            i_g = act[:, 0:Hd]
            f_g = act[:, Hd:2 * Hd]
            g_g = act[:, 2 * Hd:3 * Hd]
            o_g = act[:, 3 * Hd:4 * Hd]
            c = f_g * c + i_g * g_g
            h = o_g * jnp.tanh(c)
            hs_ref[t * B:(t + 1) * B, :] = h         # contiguous static (B,H) store
        if layer + 1 < NUM_LAYERS:
            # PyTorch reuses the same LSTM module; requires E == H for layers > 0.
            layer_in = hs_ref[...]

    # --------------- structured self-attention, batched via masks ----------------
    hs_all = hs_ref[...]                                                     # (S*B, H)
    s1 = jnp.dot(hs_all, w1t, preferred_element_type=jnp.float32)           # (S*B, da)
    s2 = jnp.dot(jnp.tanh(s1), w2t, preferred_element_type=jnp.float32)     # (S*B, r)

    # Per-batch softmax over time, done row-group-wise on the time-major slab.
    row = jax.lax.broadcasted_iota(jnp.int32, (S * B, 1), 0)
    masks = [row % B == b for b in range(B)]
    maxes = [jnp.max(jnp.where(masks[b], s2, -jnp.inf), axis=0, keepdims=True)
             for b in range(B)]
    row_max = maxes[B - 1]
    for b in range(B - 2, -1, -1):
        row_max = jnp.where(masks[b], maxes[b], row_max)
    e = jnp.exp(s2 - row_max)
    dens = [jnp.sum(jnp.where(masks[b], e, 0.0), axis=0, keepdims=True)
            for b in range(B)]
    row_den = dens[B - 1]
    for b in range(B - 2, -1, -1):
        row_den = jnp.where(masks[b], dens[b], row_den)
    a_full = e / row_den                             # exact softmax (off critical path)

    # Disjoint batch masks -> pack all B attention problems into one matmul pair.
    a_cat = jnp.concatenate(
        [jnp.where(masks[b], a_full, 0.0) for b in range(B)], axis=1)        # (S*B, B*r)

    bm = jax.lax.dot_general(a_cat, hs_all, (((0,), (0,)), ((), ())),
                             preferred_element_type=jnp.float32)             # (B*r, H)
    aat = jax.lax.dot_general(a_cat, a_cat, (((0,), (0,)), ((), ())),
                              preferred_element_type=jnp.float32)            # (B*r, B*r)
    ri = jax.lax.broadcasted_iota(jnp.int32, (B * r, B * r), 0)
    ci = jax.lax.broadcasted_iota(jnp.int32, (B * r, B * r), 1)
    eye = (ri == ci).astype(jnp.float32)
    diff = aat - eye                                 # off-diagonal blocks are exactly 0
    penal = jnp.sum(diff * diff, axis=(0, 1), keepdims=True) * (1.0 / B)     # (1, 1)

    # ---- one packed output: [BM | h_T | c_T | penal] ----
    out_ref[0:B * r, :] = bm
    out_ref[B * r:B * r + B, :] = h
    out_ref[B * r + B:B * r + 2 * B, :] = c
    out_ref[B * r + 2 * B:B * r + 2 * B + 1, :] = jnp.broadcast_to(penal, (1, Hd))


def encoder_pallas(x2d, hc0, w_slab):
    SB = x2d.shape[0]
    B = hc0.shape[0] // 2
    Hd = hc0.shape[1]
    rows_out = B * R + 2 * B + 1
    return pl.pallas_call(
        encoder_kernel,
        out_shape=jax.ShapeDtypeStruct((rows_out, Hd), jnp.float32),
        scratch_shapes=[pltpu.VMEM((SB, Hd), jnp.float32)],
    )(x2d, hc0, w_slab)


# ----------------------------- full forward ------------------------------------
def lstm_encoder_forward(input_data, hidden, cell, params):
    """Mirrors LSTMEncoder.forward(batch_size, input_data, hidden, cell, True).

    input_data: (S, B) int32 token ids (seq-major, as the PyTorch caller passes)
    hidden, cell: (1, B, H) float32
    returns (BM, hidden, cell, penal)
    """
    S, B = input_data.shape
    # TODO(synk): embedding gather stays in plain JAX (no clean rectangular BlockSpec).
    emb = jnp.take(params["embedding"], input_data, axis=0)       # (S, B, E) time-major
    x2d = emb.reshape(S * B, EMB_DIMS)                            # row = t*B + b
    hc0 = jnp.concatenate([hidden[0], cell[0]], axis=0)           # (2B, H), one DMA

    out = encoder_pallas(x2d, hc0, params["w_slab"])

    Hd, r = HIDDEN_DIMS, R
    bm = out[0:B * r, :].reshape(B, r * Hd)
    hT = out[B * r:B * r + B, :][None]
    cT = out[B * r + B:B * r + 2 * B, :][None]
    penal = out[B * r + 2 * B, 0].reshape(1)
    return bm, hT, cT, penal


# ----------------------------- reference (pure JAX) -----------------------------
def reference_forward(input_data, hidden, cell, params):
    ids = input_data.T
    emb = params["embedding"][ids]
    h, c = hidden[0], cell[0]
    w_ih = params["wih_t"].T     # (4H, E)
    w_hh = params["whh_t"].T     # (4H, H)
    out = emb
    Hd = HIDDEN_DIMS
    for _ in range(NUM_LAYERS):
        hs = []
        for t in range(out.shape[1]):
            gates = out[:, t, :] @ w_ih.T + h @ w_hh.T
            i_g = jax.nn.sigmoid(gates[:, :Hd])
            f_g = jax.nn.sigmoid(gates[:, Hd:2 * Hd])
            g_g = jnp.tanh(gates[:, 2 * Hd:3 * Hd])
            o_g = jax.nn.sigmoid(gates[:, 3 * Hd:])
            c = f_g * c + i_g * g_g
            h = o_g * jnp.tanh(c)
            hs.append(h)
        out = jnp.stack(hs, axis=1)
    BM, penal = [], 0.0
    for b in range(ids.shape[0]):
        Hm = out[b]
        s1 = Hm @ params["S1"].T
        s2 = jnp.tanh(s1) @ params["S2"].T
        A = jax.nn.softmax(s2.T, axis=-1)
        M = A @ Hm
        BM.append(M.reshape(-1))
        diff = A @ A.T - jnp.eye(R)
        penal = penal + jnp.sum(diff * diff)
    return jnp.stack(BM), h[None], c[None], jnp.array([penal / ids.shape[0]])


# ------------------------------------ main --------------------------------------
if __name__ == "__main__":
    key = jax.random.PRNGKey(0)
    k_emb, k_ih, k_hh, k_s1, k_s2, k_ids, k_h, k_c = jax.random.split(key, 8)

    bound = 1.0 / math.sqrt(HIDDEN_DIMS)
    emb_table = jax.random.normal(k_emb, (VOCAB_SIZE, EMB_DIMS), jnp.float32)
    emb_table = emb_table.at[0].set(0.0)                          # padding_idx=0
    w_ih = jax.random.uniform(k_ih, (4 * HIDDEN_DIMS, EMB_DIMS), jnp.float32, -bound, bound)
    w_hh = jax.random.uniform(k_hh, (4 * HIDDEN_DIMS, HIDDEN_DIMS), jnp.float32, -bound, bound)
    s1_w = jax.random.uniform(k_s1, (DA, HIDDEN_DIMS), jnp.float32, -0.1, 0.1)
    s2_w = jax.random.uniform(k_s2, (R, DA), jnp.float32, -0.1, 0.1)

    # Pack all weights into one lane-dense slab ONCE, at parameter-setup time.
    w_slab = jnp.zeros((EMB_DIMS + 2 * HIDDEN_DIMS + DA, 4 * HIDDEN_DIMS), jnp.float32)
    w_slab = w_slab.at[0:EMB_DIMS, :].set(w_ih.T)
    w_slab = w_slab.at[EMB_DIMS:EMB_DIMS + HIDDEN_DIMS, :].set(w_hh.T)
    w_slab = w_slab.at[EMB_DIMS + HIDDEN_DIMS:EMB_DIMS + 2 * HIDDEN_DIMS, 0:DA].set(s1_w.T)
    w_slab = w_slab.at[EMB_DIMS + 2 * HIDDEN_DIMS:, 0:R].set(s2_w.T)

    params = {"embedding": emb_table,
              "w_slab": w_slab,          # packed kernel weights
              "wih_t": w_ih.T,           # reference orientation
              "whh_t": w_hh.T,
              "S1": s1_w, "S2": s2_w}

    input_data = jax.random.randint(k_ids, (SEQ, BATCH), 0, VOCAB_SIZE, jnp.int32)
    hidden = jax.random.normal(k_h, (1, BATCH, HIDDEN_DIMS), jnp.float32)
    cell = jax.random.normal(k_c, (1, BATCH, HIDDEN_DIMS), jnp.float32)

    fwd = jax.jit(lstm_encoder_forward)
    BM, h_out, c_out, penal = fwd(input_data, hidden, cell, params)
    jax.block_until_ready((BM, h_out, c_out, penal))

    BM_r, h_r, c_r, penal_r = reference_forward(input_data, hidden, cell, params)
    assert BM.shape == (BATCH, R * HIDDEN_DIMS)
    assert h_out.shape == (1, BATCH, HIDDEN_DIMS) and c_out.shape == (1, BATCH, HIDDEN_DIMS)
    np.testing.assert_allclose(np.asarray(BM), np.asarray(BM_r), rtol=1e-2, atol=1e-2)
    np.testing.assert_allclose(np.asarray(h_out), np.asarray(h_r), rtol=1e-2, atol=1e-2)
    np.testing.assert_allclose(np.asarray(c_out), np.asarray(c_r), rtol=1e-2, atol=1e-2)
    np.testing.assert_allclose(np.asarray(penal), np.asarray(penal_r), rtol=1e-2, atol=1e-2)

    print("KERNEL_OK")
</pallas_src>

<mosaic_0001>
module attributes {stable_mosaic.version = 11 : i64} {
  func.func @encoder_kernel(%arg0: memref<16x32xf32, #tpu.memory_space<vmem>>, %arg1: memref<4x32xf32, #tpu.memory_space<vmem>>, %arg2: memref<112x128xf32, #tpu.memory_space<vmem>>, %arg3: memref<13x32xf32, #tpu.memory_space<vmem>>, %arg4: memref<16x32xf32, #tpu.memory_space<vmem>>) attributes {dimension_semantics = [], scalar_prefetch = 0 : i64, scratch_operands = 1 : i64, tpu.core_type = #tpu.core_type<tc>} {
    %c0 = arith.constant 0 : index
    %c0_0 = arith.constant 0 : index
    %0 = vector.load %arg2[%c0, %c0_0] : memref<112x128xf32, #tpu.memory_space<vmem>>, vector<32x128xf32>
    %c32 = arith.constant 32 : index
    %c0_1 = arith.constant 0 : index
    %1 = vector.load %arg2[%c32, %c0_1] : memref<112x128xf32, #tpu.memory_space<vmem>>, vector<32x128xf32>
    %c64 = arith.constant 64 : index
    %c0_2 = arith.constant 0 : index
    %2 = vector.load %arg2[%c64, %c0_2] : memref<112x128xf32, #tpu.memory_space<vmem>>, vector<32x16xf32>
    %c96 = arith.constant 96 : index
    %c0_3 = arith.constant 0 : index
    %3 = vector.load %arg2[%c96, %c0_3] : memref<112x128xf32, #tpu.memory_space<vmem>>, vector<16x4xf32>
    %c0_4 = arith.constant 0 : index
    %c0_5 = arith.constant 0 : index
    %4 = vector.load %arg1[%c0_4, %c0_5] : memref<4x32xf32, #tpu.memory_space<vmem>>, vector<2x32xf32>
    %c2 = arith.constant 2 : index
    %c0_6 = arith.constant 0 : index
    %5 = vector.load %arg1[%c2, %c0_6] : memref<4x32xf32, #tpu.memory_space<vmem>>, vector<2x32xf32>
    %6 = tpu.iota {dimensions = array<i32: 1>} : vector<2x128xi32>
    %c64_i32 = arith.constant 64 : i32
    %7 = vector.broadcast %c64_i32 : i32 to vector<2x128xi32>
    %8 = arith.cmpi sge, %6, %7 : vector<2x128xi32>
    %c96_i32 = arith.constant 96 : i32
    %9 = vector.broadcast %c96_i32 : i32 to vector<2x128xi32>
    %10 = arith.cmpi slt, %6, %9 : vector<2x128xi32>
    %11 = arith.andi %8, %10 : vector<2x128xi1>
    %c0_7 = arith.constant 0 : index
    %c0_8 = arith.constant 0 : index
    %12 = vector.load %arg0[%c0_7, %c0_8] : memref<16x32xf32, #tpu.memory_space<vmem>>, vector<16x32xf32>
    %cst = arith.constant dense<0.000000e+00> : vector<16x128xf32>
    %13 = tpu.matmul %12, %0, %cst {dimension_numbers = #tpu.dot_dimension_numbers<[1], [0], [0], [1], [0, 0, 1, 1], [], []>} : vector<16x32xf32>, vector<32x128xf32>, vector<16x128xf32> -> vector<16x128xf32>
    %14 = vector.extract_strided_slice %13 {offsets = [0, 0], sizes = [2, 128], strides = [1, 1]} : vector<16x128xf32> to vector<2x128xf32>
    %cst_9 = arith.constant dense<0.000000e+00> : vector<2x128xf32>
    %15 = tpu.matmul %4, %1, %cst_9 {dimension_numbers = #tpu.dot_dimension_numbers<[1], [0], [0], [1], [0, 0, 1, 1], [], []>} : vector<2x32xf32>, vector<32x128xf32>, vector<2x128xf32> -> vector<2x128xf32>
    %16 = arith.addf %14, %15 : vector<2x128xf32>
    %cst_10 = arith.constant 5.000000e-01 : f32
    %17 = vector.broadcast %cst_10 : f32 to vector<2x128xf32>
    %18 = arith.mulf %17, %16 : vector<2x128xf32>
    %19 = arith.select %11, %16, %18 : vector<2x128xi1>, vector<2x128xf32>
    %20 = math.tanh %19 : vector<2x128xf32>
    %cst_11 = arith.constant 5.000000e-01 : f32
    %21 = vector.broadcast %cst_11 : f32 to vector<2x128xf32>
    %22 = arith.mulf %21, %20 : vector<2x128xf32>
    %cst_12 = arith.constant 5.000000e-01 : f32
    %23 = vector.broadcast %cst_12 : f32 to vector<2x128xf32>
    %24 = arith.addf %22, %23 : vector<2x128xf32>
    %25 = arith.select %11, %20, %24 : vector<2x128xi1>, vector<2x128xf32>
    %26 = vector.extract_strided_slice %25 {offsets = [0, 0], sizes = [2, 32], strides = [1, 1]} : vector<2x128xf32> to vector<2x32xf32>
    %27 = vector.extract_strided_slice %25 {offsets = [0, 32], sizes = [2, 32], strides = [1, 1]} : vector<2x128xf32> to vector<2x32xf32>
    %28 = vector.extract_strided_slice %25 {offsets = [0, 64], sizes = [2, 32], strides = [1, 1]} : vector<2x128xf32> to vector<2x32xf32>
    %29 = vector.extract_strided_slice %25 {offsets = [0, 96], sizes = [2, 32], strides = [1, 1]} : vector<2x128xf32> to vector<2x32xf32>
    %30 = arith.mulf %27, %5 : vector<2x32xf32>
    %31 = arith.mulf %26, %28 : vector<2x32xf32>
    %32 = arith.addf %30, %31 : vector<2x32xf32>
    %33 = math.tanh %32 : vector<2x32xf32>
    %34 = arith.mulf %29, %33 : vector<2x32xf32>
    %c0_13 = arith.constant 0 : index
    %c0_14 = arith.constant 0 : index
    %35 = vector.load %arg4[%c0_13, %c0_14] : memref<16x32xf32, #tpu.memory_space<vmem>>, vector<2x32xf32>
    tpu.vector_store %arg4[%c0_13, %c0_14], %34 {strides = array<i32>} : memref<16x32xf32, #tpu.memory_space<vmem>>, vector<2x32xf32>,
    %36 = vector.extract_strided_slice %13 {offsets = [2, 0], sizes = [2, 128], strides = [1, 1]} : vector<16x128xf32> to vector<2x128xf32>
    %cst_15 = arith.constant dense<0.000000e+00> : vector<2x128xf32>
    %37 = tpu.matmul %34, %1, %cst_15 {dimension_numbers = #tpu.dot_dimension_numbers<[1], [0], [0], [1], [0, 0, 1, 1], [], []>} : vector<2x32xf32>, vector<32x128xf32>, vector<2x128xf32> -> vector<2x128xf32>
    %38 = arith.addf %36, %37 : vector<2x128xf32>
    %cst_16 = arith.constant 5.000000e-01 : f32
    %39 = vector.broadcast %cst_16 : f32 to vector<2x128xf32>
    %40 = arith.mulf %39, %38 : vector<2x128xf32>
    %41 = arith.select %11, %38, %40 : vector<2x128xi1>, vector<2x128xf32>
    %42 = math.tanh %41 : vector<2x128xf32>
    %cst_17 = arith.constant 5.000000e-01 : f32
    %43 = vector.broadcast %cst_17 : f32 to vector<2x128xf32>
    %44 = arith.mulf %43, %42 : vector<2x128xf32>
    %cst_18 = arith.constant 5.000000e-01 : f32
    %45 = vector.broadcast %cst_18 : f32 to vector<2x128xf32>
    %46 = arith.addf %44, %45 : vector<2x128xf32>
    %47 = arith.select %11, %42, %46 : vector<2x128xi1>, vector<2x128xf32>
    %48 = vector.extract_strided_slice %47 {offsets = [0, 0], sizes = [2, 32], strides = [1, 1]} : vector<2x128xf32> to vector<2x32xf32>
    %49 = vector.extract_strided_slice %47 {offsets = [0, 32], sizes = [2, 32], strides = [1, 1]} : vector<2x128xf32> to vector<2x32xf32>
    %50 = vector.extract_strided_slice %47 {offsets = [0, 64], sizes = [2, 32], strides = [1, 1]} : vector<2x128xf32> to vector<2x32xf32>
    %51 = vector.extract_strided_slice %47 {offsets = [0, 96], sizes = [2, 32], strides = [1, 1]} : vector<2x128xf32> to vector<2x32xf32>
    %52 = arith.mulf %49, %32 : vector<2x32xf32>
    %53 = arith.mulf %48, %50 : vector<2x32xf32>
    %54 = arith.addf %52, %53 : vector<2x32xf32>
    %55 = math.tanh %54 : vector<2x32xf32>
    %56 = arith.mulf %51, %55 : vector<2x32xf32>
    %c2_19 = arith.constant 2 : index
    %c0_20 = arith.constant 0 : index
    %57 = vector.load %arg4[%c2_19, %c0_20] : memref<16x32xf32, #tpu.memory_space<vmem>>, vector<2x32xf32>
    tpu.vector_store %arg4[%c2_19, %c0_20], %56 {strides = array<i32>} : memref<16x32xf32, #tpu.memory_space<vmem>>, vector<2x32xf32>,
    %58 = vector.extract_strided_slice %13 {offsets = [4, 0], sizes = [2, 128], strides = [1, 1]} : vector<16x128xf32> to vector<2x128xf32>
    %cst_21 = arith.constant dense<0.000000e+00> : vector<2x128xf32>
    %59 = tpu.matmul %56, %1, %cst_21 {dimension_numbers = #tpu.dot_dimension_numbers<[1], [0], [0], [1], [0, 0, 1, 1], [], []>} : vector<2x32xf32>, vector<32x128xf32>, vector<2x128xf32> -> vector<2x128xf32>
    %60 = arith.addf %58, %59 : vector<2x128xf32>
    %cst_22 = arith.constant 5.000000e-01 : f32
    %61 = vector.broadcast %cst_22 : f32 to vector<2x128xf32>
    %62 = arith.mulf %61, %60 : vector<2x128xf32>
    %63 = arith.select %11, %60, %62 : vector<2x128xi1>, vector<2x128xf32>
    %64 = math.tanh %63 : vector<2x128xf32>
    %cst_23 = arith.constant 5.000000e-01 : f32
    %65 = vector.broadcast %cst_23 : f32 to vector<2x128xf32>
    %66 = arith.mulf %65, %64 : vector<2x128xf32>
    %cst_24 = arith.constant 5.000000e-01 : f32
    %67 = vector.broadcast %cst_24 : f32 to vector<2x128xf32>
    %68 = arith.addf %66, %67 : vector<2x128xf32>
    %69 = arith.select %11, %64, %68 : vector<2x128xi1>, vector<2x128xf32>
    %70 = vector.extract_strided_slice %69 {offsets = [0, 0], sizes = [2, 32], strides = [1, 1]} : vector<2x128xf32> to vector<2x32xf32>
    %71 = vector.extract_strided_slice %69 {offsets = [0, 32], sizes = [2, 32], strides = [1, 1]} : vector<2x128xf32> to vector<2x32xf32>
    %72 = vector.extract_strided_slice %69 {offsets = [0, 64], sizes = [2, 32], strides = [1, 1]} : vector<2x128xf32> to vector<2x32xf32>
    %73 = vector.extract_strided_slice %69 {offsets = [0, 96], sizes = [2, 32], strides = [1, 1]} : vector<2x128xf32> to vector<2x32xf32>
    %74 = arith.mulf %71, %54 : vector<2x32xf32>
    %75 = arith.mulf %70, %72 : vector<2x32xf32>
    %76 = arith.addf %74, %75 : vector<2x32xf32>
    %77 = math.tanh %76 : vector<2x32xf32>
    %78 = arith.mulf %73, %77 : vector<2x32xf32>
    %c4 = arith.constant 4 : index
    %c0_25 = arith.constant 0 : index
    %79 = vector.load %arg4[%c4, %c0_25] : memref<16x32xf32, #tpu.memory_space<vmem>>, vector<2x32xf32>
    tpu.vector_store %arg4[%c4, %c0_25], %78 {strides = array<i32>} : memref<16x32xf32, #tpu.memory_space<vmem>>, vector<2x32xf32>,
    %80 = vector.extract_strided_slice %13 {offsets = [6, 0], sizes = [2, 128], strides = [1, 1]} : vector<16x128xf32> to vector<2x128xf32>
    %cst_26 = arith.constant dense<0.000000e+00> : vector<2x128xf32>
    %81 = tpu.matmul %78, %1, %cst_26 {dimension_numbers = #tpu.dot_dimension_numbers<[1], [0], [0], [1], [0, 0, 1, 1], [], []>} : vector<2x32xf32>, vector<32x128xf32>, vector<2x128xf32> -> vector<2x128xf32>
    %82 = arith.addf %80, %81 : vector<2x128xf32>
    %cst_27 = arith.constant 5.000000e-01 : f32
    %83 = vector.broadcast %cst_27 : f32 to vector<2x128xf32>
    %84 = arith.mulf %83, %82 : vector<2x128xf32>
    %85 = arith.select %11, %82, %84 : vector<2x128xi1>, vector<2x128xf32>
    %86 = math.tanh %85 : vector<2x128xf32>
    %cst_28 = arith.constant 5.000000e-01 : f32
    %87 = vector.broadcast %cst_28 : f32 to vector<2x128xf32>
    %88 = arith.mulf %87, %86 : vector<2x128xf32>
    %cst_29 = arith.constant 5.000000e-01 : f32
    %89 = vector.broadcast %cst_29 : f32 to vector<2x128xf32>
    %90 = arith.addf %88, %89 : vector<2x128xf32>
    %91 = arith.select %11, %86, %90 : vector<2x128xi1>, vector<2x128xf32>
    %92 = vector.extract_strided_slice %91 {offsets = [0, 0], sizes = [2, 32], strides = [1, 1]} : vector<2x128xf32> to vector<2x32xf32>
    %93 = vector.extract_strided_slice %91 {offsets = [0, 32], sizes = [2, 32], strides = [1, 1]} : vector<2x128xf32> to vector<2x32xf32>
    %94 = vector.extract_strided_slice %91 {offsets = [0, 64], sizes = [2, 32], strides = [1, 1]} : vector<2x128xf32> to vector<2x32xf32>
    %95 = vector.extract_strided_slice %91 {offsets = [0, 96], sizes = [2, 32], strides = [1, 1]} : vector<2x128xf32> to vector<2x32xf32>
    %96 = arith.mulf %93, %76 : vector<2x32xf32>
    %97 = arith.mulf %92, %94 : vector<2x32xf32>
    %98 = arith.addf %96, %97 : vector<2x32xf32>
    %99 = math.tanh %98 : vector<2x32xf32>
    %100 = arith.mulf %95, %99 : vector<2x32xf32>
    %c6 = arith.constant 6 : index
    %c0_30 = arith.constant 0 : index
    %101 = vector.load %arg4[%c6, %c0_30] : memref<16x32xf32, #tpu.memory_space<vmem>>, vector<2x32xf32>
    tpu.vector_store %arg4[%c6, %c0_30], %100 {strides = array<i32>} : memref<16x32xf32, #tpu.memory_space<vmem>>, vector<2x32xf32>,
    %102 = vector.extract_strided_slice %13 {offsets = [8, 0], sizes = [2, 128], strides = [1, 1]} : vector<16x128xf32> to vector<2x128xf32>
    %cst_31 = arith.constant dense<0.000000e+00> : vector<2x128xf32>
    %103 = tpu.matmul %100, %1, %cst_31 {dimension_numbers = #tpu.dot_dimension_numbers<[1], [0], [0], [1], [0, 0, 1, 1], [], []>} : vector<2x32xf32>, vector<32x128xf32>, vector<2x128xf32> -> vector<2x128xf32>
    %104 = arith.addf %102, %103 : vector<2x128xf32>
    %cst_32 = arith.constant 5.000000e-01 : f32
    %105 = vector.broadcast %cst_32 : f32 to vector<2x128xf32>
    %106 = arith.mulf %105, %104 : vector<2x128xf32>
    %107 = arith.select %11, %104, %106 : vector<2x128xi1>, vector<2x128xf32>
    %108 = math.tanh %107 : vector<2x128xf32>
    %cst_33 = arith.constant 5.000000e-01 : f32
    %109 = vector.broadcast %cst_33 : f32 to vector<2x128xf32>
    %110 = arith.mulf %109, %108 : vector<2x128xf32>
    %cst_34 = arith.constant 5.000000e-01 : f32
    %111 = vector.broadcast %cst_34 : f32 to vector<2x128xf32>
    %112 = arith.addf %110, %111 : vector<2x128xf32>
    %113 = arith.select %11, %108, %112 : vector<2x128xi1>, vector<2x128xf32>
    %114 = vector.extract_strided_slice %113 {offsets = [0, 0], sizes = [2, 32], strides = [1, 1]} : vector<2x128xf32> to vector<2x32xf32>
    %115 = vector.extract_strided_slice %113 {offsets = [0, 32], sizes = [2, 32], strides = [1, 1]} : vector<2x128xf32> to vector<2x32xf32>
    %116 = vector.extract_strided_slice %113 {offsets = [0, 64], sizes = [2, 32], strides = [1, 1]} : vector<2x128xf32> to vector<2x32xf32>
    %117 = vector.extract_strided_slice %113 {offsets = [0, 96], sizes = [2, 32], strides = [1, 1]} : vector<2x128xf32> to vector<2x32xf32>
    %118 = arith.mulf %115, %98 : vector<2x32xf32>
    %119 = arith.mulf %114, %116 : vector<2x32xf32>
    %120 = arith.addf %118, %119 : vector<2x32xf32>
    %121 = math.tanh %120 : vector<2x32xf32>
    %122 = arith.mulf %117, %121 : vector<2x32xf32>
    %c8 = arith.constant 8 : index
    %c0_35 = arith.constant 0 : index
    %123 = vector.load %arg4[%c8, %c0_35] : memref<16x32xf32, #tpu.memory_space<vmem>>, vector<2x32xf32>
    tpu.vector_store %arg4[%c8, %c0_35], %122 {strides = array<i32>} : memref<16x32xf32, #tpu.memory_space<vmem>>, vector<2x32xf32>,
    %124 = vector.extract_strided_slice %13 {offsets = [10, 0], sizes = [2, 128], strides = [1, 1]} : vector<16x128xf32> to vector<2x128xf32>
    %cst_36 = arith.constant dense<0.000000e+00> : vector<2x128xf32>
    %125 = tpu.matmul %122, %1, %cst_36 {dimension_numbers = #tpu.dot_dimension_numbers<[1], [0], [0], [1], [0, 0, 1, 1], [], []>} : vector<2x32xf32>, vector<32x128xf32>, vector<2x128xf32> -> vector<2x128xf32>
    %126 = arith.addf %124, %125 : vector<2x128xf32>
    %cst_37 = arith.constant 5.000000e-01 : f32
    %127 = vector.broadcast %cst_37 : f32 to vector<2x128xf32>
    %128 = arith.mulf %127, %126 : vector<2x128xf32>
    %129 = arith.select %11, %126, %128 : vector<2x128xi1>, vector<2x128xf32>
    %130 = math.tanh %129 : vector<2x128xf32>
    %cst_38 = arith.constant 5.000000e-01 : f32
    %131 = vector.broadcast %cst_38 : f32 to vector<2x128xf32>
    %132 = arith.mulf %131, %130 : vector<2x128xf32>
    %cst_39 = arith.constant 5.000000e-01 : f32
    %133 = vector.broadcast %cst_39 : f32 to vector<2x128xf32>
    %134 = arith.addf %132, %133 : vector<2x128xf32>
    %135 = arith.select %11, %130, %134 : vector<2x128xi1>, vector<2x128xf32>
    %136 = vector.extract_strided_slice %135 {offsets = [0, 0], sizes = [2, 32], strides = [1, 1]} : vector<2x128xf32> to vector<2x32xf32>
    %137 = vector.extract_strided_slice %135 {offsets = [0, 32], sizes = [2, 32], strides = [1, 1]} : vector<2x128xf32> to vector<2x32xf32>
    %138 = vector.extract_strided_slice %135 {offsets = [0, 64], sizes = [2, 32], strides = [1, 1]} : vector<2x128xf32> to vector<2x32xf32>
    %139 = vector.extract_strided_slice %135 {offsets = [0, 96], sizes = [2, 32], strides = [1, 1]} : vector<2x128xf32> to vector<2x32xf32>
    %140 = arith.mulf %137, %120 : vector<2x32xf32>
    %141 = arith.mulf %136, %138 : vector<2x32xf32>
    %142 = arith.addf %140, %141 : vector<2x32xf32>
    %143 = math.tanh %142 : vector<2x32xf32>
    %144 = arith.mulf %139, %143 : vector<2x32xf32>
    %c10 = arith.constant 10 : index
    %c0_40 = arith.constant 0 : index
    %145 = vector.load %arg4[%c10, %c0_40] : memref<16x32xf32, #tpu.memory_space<vmem>>, vector<2x32xf32>
    tpu.vector_store %arg4[%c10, %c0_40], %144 {strides = array<i32>} : memref<16x32xf32, #tpu.memory_space<vmem>>, vector<2x32xf32>,
    %146 = vector.extract_strided_slice %13 {offsets = [12, 0], sizes = [2, 128], strides = [1, 1]} : vector<16x128xf32> to vector<2x128xf32>
    %cst_41 = arith.constant dense<0.000000e+00> : vector<2x128xf32>
    %147 = tpu.matmul %144, %1, %cst_41 {dimension_numbers = #tpu.dot_dimension_numbers<[1], [0], [0], [1], [0, 0, 1, 1], [], []>} : vector<2x32xf32>, vector<32x128xf32>, vector<2x128xf32> -> vector<2x128xf32>
    %148 = arith.addf %146, %147 : vector<2x128xf32>
    %cst_42 = arith.constant 5.000000e-01 : f32
    %149 = vector.broadcast %cst_42 : f32 to vector<2x128xf32>
    %150 = arith.mulf %149, %148 : vector<2x128xf32>
    %151 = arith.select %11, %148, %150 : vector<2x128xi1>, vector<2x128xf32>
    %152 = math.tanh %151 : vector<2x128xf32>
    %cst_43 = arith.constant 5.000000e-01 : f32
    %153 = vector.broadcast %cst_43 : f32 to vector<2x128xf32>
    %154 = arith.mulf %153, %152 : vector<2x128xf32>
    %cst_44 = arith.constant 5.000000e-01 : f32
    %155 = vector.broadcast %cst_44 : f32 to vector<2x128xf32>
    %156 = arith.addf %154, %155 : vector<2x128xf32>
    %157 = arith.select %11, %152, %156 : vector<2x128xi1>, vector<2x128xf32>
    %158 = vector.extract_strided_slice %157 {offsets = [0, 0], sizes = [2, 32], strides = [1, 1]} : vector<2x128xf32> to vector<2x32xf32>
    %159 = vector.extract_strided_slice %157 {offsets = [0, 32], sizes = [2, 32], strides = [1, 1]} : vector<2x128xf32> to vector<2x32xf32>
    %160 = vector.extract_strided_slice %157 {offsets = [0, 64], sizes = [2, 32], strides = [1, 1]} : vector<2x128xf32> to vector<2x32xf32>
    %161 = vector.extract_strided_slice %157 {offsets = [0, 96], sizes = [2, 32], strides = [1, 1]} : vector<2x128xf32> to vector<2x32xf32>
    %162 = arith.mulf %159, %142 : vector<2x32xf32>
    %163 = arith.mulf %158, %160 : vector<2x32xf32>
    %164 = arith.addf %162, %163 : vector<2x32xf32>
    %165 = math.tanh %164 : vector<2x32xf32>
    %166 = arith.mulf %161, %165 : vector<2x32xf32>
    %c12 = arith.constant 12 : index
    %c0_45 = arith.constant 0 : index
    %167 = vector.load %arg4[%c12, %c0_45] : memref<16x32xf32, #tpu.memory_space<vmem>>, vector<2x32xf32>
    tpu.vector_store %arg4[%c12, %c0_45], %166 {strides = array<i32>} : memref<16x32xf32, #tpu.memory_space<vmem>>, vector<2x32xf32>,
    %168 = vector.extract_strided_slice %13 {offsets = [14, 0], sizes = [2, 128], strides = [1, 1]} : vector<16x128xf32> to vector<2x128xf32>
    %cst_46 = arith.constant dense<0.000000e+00> : vector<2x128xf32>
    %169 = tpu.matmul %166, %1, %cst_46 {dimension_numbers = #tpu.dot_dimension_numbers<[1], [0], [0], [1], [0, 0, 1, 1], [], []>} : vector<2x32xf32>, vector<32x128xf32>, vector<2x128xf32> -> vector<2x128xf32>
    %170 = arith.addf %168, %169 : vector<2x128xf32>
    %cst_47 = arith.constant 5.000000e-01 : f32
    %171 = vector.broadcast %cst_47 : f32 to vector<2x128xf32>
    %172 = arith.mulf %171, %170 : vector<2x128xf32>
    %173 = arith.select %11, %170, %172 : vector<2x128xi1>, vector<2x128xf32>
    %174 = math.tanh %173 : vector<2x128xf32>
    %cst_48 = arith.constant 5.000000e-01 : f32
    %175 = vector.broadcast %cst_48 : f32 to vector<2x128xf32>
    %176 = arith.mulf %175, %174 : vector<2x128xf32>
    %cst_49 = arith.constant 5.000000e-01 : f32
    %177 = vector.broadcast %cst_49 : f32 to vector<2x128xf32>
    %178 = arith.addf %176, %177 : vector<2x128xf32>
    %179 = arith.select %11, %174, %178 : vector<2x128xi1>, vector<2x128xf32>
    %180 = vector.extract_strided_slice %179 {offsets = [0, 0], sizes = [2, 32], strides = [1, 1]} : vector<2x128xf32> to vector<2x32xf32>
    %181 = vector.extract_strided_slice %179 {offsets = [0, 32], sizes = [2, 32], strides = [1, 1]} : vector<2x128xf32> to vector<2x32xf32>
    %182 = vector.extract_strided_slice %179 {offsets = [0, 64], sizes = [2, 32], strides = [1, 1]} : vector<2x128xf32> to vector<2x32xf32>
    %183 = vector.extract_strided_slice %179 {offsets = [0, 96], sizes = [2, 32], strides = [1, 1]} : vector<2x128xf32> to vector<2x32xf32>
    %184 = arith.mulf %181, %164 : vector<2x32xf32>
    %185 = arith.mulf %180, %182 : vector<2x32xf32>
    %186 = arith.addf %184, %185 : vector<2x32xf32>
    %187 = math.tanh %186 : vector<2x32xf32>
    %188 = arith.mulf %183, %187 : vector<2x32xf32>
    %c14 = arith.constant 14 : index
    %c0_50 = arith.constant 0 : index
    %189 = vector.load %arg4[%c14, %c0_50] : memref<16x32xf32, #tpu.memory_space<vmem>>, vector<2x32xf32>
    tpu.vector_store %arg4[%c14, %c0_50], %188 {strides = array<i32>} : memref<16x32xf32, #tpu.memory_space<vmem>>, vector<2x32xf32>,
    %c0_51 = arith.constant 0 : index
    %c0_52 = arith.constant 0 : index
    %190 = vector.load %arg4[%c0_51, %c0_52] : memref<16x32xf32, #tpu.memory_space<vmem>>, vector<16x32xf32>
    %cst_53 = arith.constant dense<0.000000e+00> : vector<16x16xf32>
    %191 = tpu.matmul %190, %2, %cst_53 {dimension_numbers = #tpu.dot_dimension_numbers<[1], [0], [0], [1], [0, 0, 1, 1], [], []>} : vector<16x32xf32>, vector<32x16xf32>, vector<16x16xf32> -> vector<16x16xf32>
    %192 = math.tanh %191 : vector<16x16xf32>
    %cst_54 = arith.constant dense<0.000000e+00> : vector<16x4xf32>
    %193 = tpu.matmul %192, %3, %cst_54 {dimension_numbers = #tpu.dot_dimension_numbers<[1], [0], [0], [1], [0, 0, 1, 1], [], []>} : vector<16x16xf32>, vector<16x4xf32>, vector<16x4xf32> -> vector<16x4xf32>
    %194 = tpu.iota {dimensions = array<i32: 0>} : vector<16x1xi32>
    %c2_i32 = arith.constant 2 : i32
    %c0_i32 = arith.constant 0 : i32
    %195 = arith.cmpi eq, %c2_i32, %c0_i32 : i32
    %c1_i32 = arith.constant 1 : i32
    %196 = arith.select %195, %c1_i32, %c2_i32 : i32
    %197 = vector.broadcast %196 : i32 to vector<16x1xi32>
    %198 = arith.remsi %194, %197 : vector<16x1xi32>
    %c0_i32_55 = arith.constant 0 : i32
    %199 = vector.broadcast %c0_i32_55 : i32 to vector<16x1xi32>
    %200 = arith.cmpi ne, %198, %199 : vector<16x1xi32>
    %c0_i32_56 = arith.constant 0 : i32
    %201 = vector.broadcast %c0_i32_56 : i32 to vector<16x1xi32>
    %202 = arith.cmpi slt, %198, %201 : vector<16x1xi32>
    %c0_i32_57 = arith.constant 0 : i32
    %203 = arith.cmpi slt, %196, %c0_i32_57 : i32
    %204 = vector.broadcast %203 : i1 to vector<16x1xi1>
    %205 = vector.broadcast %204 : vector<16x1xi1> to vector<16x1xi1>
    %206 = arith.xori %202, %205 : vector<16x1xi1>
    %207 = arith.andi %206, %200 : vector<16x1xi1>
    %208 = vector.broadcast %196 : i32 to vector<16x1xi32>
    %209 = arith.addi %198, %208 : vector<16x1xi32>
    %210 = arith.select %207, %209, %198 : vector<16x1xi1>, vector<16x1xi32>
    %c0_i32_58 = arith.constant 0 : i32
    %211 = vector.broadcast %c0_i32_58 : i32 to vector<16x1xi32>
    %212 = arith.cmpi eq, %210, %211 : vector<16x1xi32>
    %c2_i32_59 = arith.constant 2 : i32
    %c0_i32_60 = arith.constant 0 : i32
    %213 = arith.cmpi eq, %c2_i32_59, %c0_i32_60 : i32
    %c1_i32_61 = arith.constant 1 : i32
    %214 = arith.select %213, %c1_i32_61, %c2_i32_59 : i32
    %215 = vector.broadcast %214 : i32 to vector<16x1xi32>
    %216 = arith.remsi %194, %215 : vector<16x1xi32>
    %c0_i32_62 = arith.constant 0 : i32
    %217 = vector.broadcast %c0_i32_62 : i32 to vector<16x1xi32>
    %218 = arith.cmpi ne, %216, %217 : vector<16x1xi32>
    %c0_i32_63 = arith.constant 0 : i32
    %219 = vector.broadcast %c0_i32_63 : i32 to vector<16x1xi32>
    %220 = arith.cmpi slt, %216, %219 : vector<16x1xi32>
    %c0_i32_64 = arith.constant 0 : i32
    %221 = arith.cmpi slt, %214, %c0_i32_64 : i32
    %222 = vector.broadcast %221 : i1 to vector<16x1xi1>
    %223 = vector.broadcast %222 : vector<16x1xi1> to vector<16x1xi1>
    %224 = arith.xori %220, %223 : vector<16x1xi1>
    %225 = arith.andi %224, %218 : vector<16x1xi1>
    %226 = vector.broadcast %214 : i32 to vector<16x1xi32>
    %227 = arith.addi %216, %226 : vector<16x1xi32>
    %228 = arith.select %225, %227, %216 : vector<16x1xi1>, vector<16x1xi32>
    %c1_i32_65 = arith.constant 1 : i32
    %229 = vector.broadcast %c1_i32_65 : i32 to vector<16x1xi32>
    %230 = arith.cmpi eq, %228, %229 : vector<16x1xi32>
    %cst_66 = arith.constant 0xFF800000 : f32
    %231 = vector.shape_cast %212 : vector<16x1xi1> to vector<16x1xi1>
    %232 = vector.broadcast %231 : vector<16x1xi1> to vector<16x4xi1>
    %233 = vector.broadcast %cst_66 : f32 to vector<16x4xf32>
    %234 = arith.select %232, %193, %233 : vector<16x4xi1>, vector<16x4xf32>
    %cst_67 = arith.constant dense<0xFF800000> : vector<4xf32>
    %235 = vector.multi_reduction <maximumf>, %234, %cst_67 [0] : vector<16x4xf32> to vector<4xf32>
    %236 = vector.shape_cast %235 : vector<4xf32> to vector<1x4xf32>
    %cst_68 = arith.constant 0xFF800000 : f32
    %237 = vector.shape_cast %230 : vector<16x1xi1> to vector<16x1xi1>
    %238 = vector.broadcast %237 : vector<16x1xi1> to vector<16x4xi1>
    %239 = vector.broadcast %cst_68 : f32 to vector<16x4xf32>
    %240 = arith.select %238, %193, %239 : vector<16x4xi1>, vector<16x4xf32>
    %cst_69 = arith.constant dense<0xFF800000> : vector<4xf32>
    %241 = vector.multi_reduction <maximumf>, %240, %cst_69 [0] : vector<16x4xf32> to vector<4xf32>
    %242 = vector.shape_cast %241 : vector<4xf32> to vector<1x4xf32>
    %243 = vector.shape_cast %212 : vector<16x1xi1> to vector<16x1xi1>
    %244 = vector.broadcast %243 : vector<16x1xi1> to vector<16x4xi1>
    %245 = vector.shape_cast %236 : vector<1x4xf32> to vector<1x4xf32>
    %246 = vector.broadcast %245 : vector<1x4xf32> to vector<16x4xf32>
    %247 = vector.shape_cast %242 : vector<1x4xf32> to vector<1x4xf32>
    %248 = vector.broadcast %247 : vector<1x4xf32> to vector<16x4xf32>
    %249 = arith.select %244, %246, %248 : vector<16x4xi1>, vector<16x4xf32>
    %250 = arith.subf %193, %249 : vector<16x4xf32>
    %251 = math.exp %250 : vector<16x4xf32>
    %cst_70 = arith.constant 0.000000e+00 : f32
    %252 = vector.shape_cast %212 : vector<16x1xi1> to vector<16x1xi1>
    %253 = vector.broadcast %252 : vector<16x1xi1> to vector<16x4xi1>
    %254 = vector.broadcast %cst_70 : f32 to vector<16x4xf32>
    %255 = arith.select %253, %251, %254 : vector<16x4xi1>, vector<16x4xf32>
    %cst_71 = arith.constant dense<0.000000e+00> : vector<4xf32>
    %256 = vector.multi_reduction <add>, %255, %cst_71 [0] : vector<16x4xf32> to vector<4xf32>
    %257 = vector.shape_cast %256 : vector<4xf32> to vector<1x4xf32>
    %cst_72 = arith.constant 0.000000e+00 : f32
    %258 = vector.shape_cast %230 : vector<16x1xi1> to vector<16x1xi1>
    %259 = vector.broadcast %258 : vector<16x1xi1> to vector<16x4xi1>
    %260 = vector.broadcast %cst_72 : f32 to vector<16x4xf32>
    %261 = arith.select %259, %251, %260 : vector<16x4xi1>, vector<16x4xf32>
    %cst_73 = arith.constant dense<0.000000e+00> : vector<4xf32>
    %262 = vector.multi_reduction <add>, %261, %cst_73 [0] : vector<16x4xf32> to vector<4xf32>
    %263 = vector.shape_cast %262 : vector<4xf32> to vector<1x4xf32>
    %264 = vector.shape_cast %212 : vector<16x1xi1> to vector<16x1xi1>
    %265 = vector.broadcast %264 : vector<16x1xi1> to vector<16x4xi1>
    %266 = vector.shape_cast %257 : vector<1x4xf32> to vector<1x4xf32>
    %267 = vector.broadcast %266 : vector<1x4xf32> to vector<16x4xf32>
    %268 = vector.shape_cast %263 : vector<1x4xf32> to vector<1x4xf32>
    %269 = vector.broadcast %268 : vector<1x4xf32> to vector<16x4xf32>
    %270 = arith.select %265, %267, %269 : vector<16x4xi1>, vector<16x4xf32>
    %271 = arith.divf %251, %270 : vector<16x4xf32>
    %cst_74 = arith.constant 0.000000e+00 : f32
    %272 = vector.shape_cast %212 : vector<16x1xi1> to vector<16x1xi1>
    %273 = vector.broadcast %272 : vector<16x1xi1> to vector<16x4xi1>
    %274 = vector.broadcast %cst_74 : f32 to vector<16x4xf32>
    %275 = arith.select %273, %271, %274 : vector<16x4xi1>, vector<16x4xf32>
    %cst_75 = arith.constant 0.000000e+00 : f32
    %276 = vector.shape_cast %230 : vector<16x1xi1> to vector<16x1xi1>
    %277 = vector.broadcast %276 : vector<16x1xi1> to vector<16x4xi1>
    %278 = vector.broadcast %cst_75 : f32 to vector<16x4xf32>
    %279 = arith.select %277, %271, %278 : vector<16x4xi1>, vector<16x4xf32>
    %280 = tpu.concatenate %275, %279 in 1 : vector<16x4xf32>, vector<16x4xf32> -> vector<16x8xf32>
    %cst_76 = arith.constant dense<0.000000e+00> : vector<8x32xf32>
    %281 = tpu.matmul %280, %190, %cst_76 {dimension_numbers = #tpu.dot_dimension_numbers<[0], [0], [1], [1], [0, 1, 1, 1], [], []>} : vector<16x8xf32>, vector<16x32xf32>, vector<8x32xf32> -> vector<8x32xf32>
    %cst_77 = arith.constant dense<0.000000e+00> : vector<8x8xf32>
    %282 = tpu.matmul %280, %280, %cst_77 {dimension_numbers = #tpu.dot_dimension_numbers<[0], [0], [1], [1], [0, 1, 1, 1], [], []>} : vector<16x8xf32>, vector<16x8xf32>, vector<8x8xf32> -> vector<8x8xf32>
    %283 = tpu.iota {dimensions = array<i32: 0>} : vector<8x8xi32>
    %284 = tpu.iota {dimensions = array<i32: 1>} : vector<8x8xi32>
    %285 = arith.cmpi eq, %283, %284 : vector<8x8xi32>
    %286 = arith.extui %285 : vector<8x8xi1> to vector<8x8xi32>
    %287 = arith.sitofp %286 : vector<8x8xi32> to vector<8x8xf32>
    %288 = arith.subf %282, %287 : vector<8x8xf32>
    %289 = arith.mulf %288, %288 : vector<8x8xf32>
    %290 = vector.shape_cast %289 : vector<8x8xf32> to vector<1x8x8xf32>
    %cst_78 = arith.constant dense<0.000000e+00> : vector<1xf32>
    %291 = vector.multi_reduction <add>, %290, %cst_78 [1, 2] : vector<1x8x8xf32> to vector<1xf32>
    %292 = vector.shape_cast %291 : vector<1xf32> to vector<1x1x1xf32>
    %293 = vector.extract %292[0, 0, 0] : f32 from vector<1x1x1xf32>
    %294 = vector.broadcast %293 : f32 to vector<1x1xf32>
    %cst_79 = arith.constant 5.000000e-01 : f32
    %295 = vector.broadcast %cst_79 : f32 to vector<1x1xf32>
    %296 = arith.mulf %294, %295 : vector<1x1xf32>
    %c0_80 = arith.constant 0 : index
    %c0_81 = arith.constant 0 : index
    %297 = vector.load %arg3[%c0_80, %c0_81] : memref<13x32xf32, #tpu.memory_space<vmem>>, vector<8x32xf32>
    tpu.vector_store %arg3[%c0_80, %c0_81], %281 {strides = array<i32>} : memref<13x32xf32, #tpu.memory_space<vmem>>, vector<8x32xf32>,
    %c8_82 = arith.constant 8 : index
    %c0_83 = arith.constant 0 : index
    %298 = vector.load %arg3[%c8_82, %c0_83] : memref<13x32xf32, #tpu.memory_space<vmem>>, vector<2x32xf32>
    tpu.vector_store %arg3[%c8_82, %c0_83], %188 {strides = array<i32>} : memref<13x32xf32, #tpu.memory_space<vmem>>, vector<2x32xf32>,
    %c10_84 = arith.constant 10 : index
    %c0_85 = arith.constant 0 : index
    %299 = vector.load %arg3[%c10_84, %c0_85] : memref<13x32xf32, #tpu.memory_space<vmem>>, vector<2x32xf32>
    tpu.vector_store %arg3[%c10_84, %c0_85], %186 {strides = array<i32>} : memref<13x32xf32, #tpu.memory_space<vmem>>, vector<2x32xf32>,
    %300 = vector.shape_cast %296 : vector<1x1xf32> to vector<1x1xf32>
    %301 = vector.broadcast %300 : vector<1x1xf32> to vector<1x32xf32>
    %c12_86 = arith.constant 12 : index
    %c0_87 = arith.constant 0 : index
    %302 = vector.load %arg3[%c12_86, %c0_87] : memref<13x32xf32, #tpu.memory_space<vmem>>, vector<1x32xf32>
    tpu.vector_store %arg3[%c12_86, %c0_87], %301 {strides = array<i32>} : memref<13x32xf32, #tpu.memory_space<vmem>>, vector<1x32xf32>,
    return
  }
}

</mosaic_0001>

<llo_original>
// kernel: lstm_encoder_forward.1
$region0: #{lstm_encoder_forward.1}
  #allocation0 [shape = 'u32[]', space=smem, size = 0x4, offset = 0x4, fixed_abs, tag = 'smem constant byte address 0x4 - core index']
  #allocation1 [shape = 'u32[72,128]{1,0:T(1,128)}', space=vmem, size = 0x9000, scoped, tag = 'internal scratch']
  #allocation2 [shape = 'f32[16,32]{1,0:T(8,128)}', space=vmem, size = 0x2000, scoped, tag = 'scratch operand']
  %s0 = inlined_call_operand.vmem [shape: f32[16,32], index: 0, kind: input, shape index: {}]
  %s1 = inlined_call_operand.vmem [shape: f32[4,32], index: 1, kind: input, shape index: {}]
  %s2 = inlined_call_operand.vmem [shape: f32[112,128], index: 2, kind: input, shape index: {}]
  %s3 = inlined_call_operand.vmem [shape: f32[13,32], index: 3, kind: output, shape index: {}]
  %s4 = sld [smem:[#allocation0]]
  $region22: #{lstm_encoder_forward.1} parent=0
    _
  %s6 = ssub.s32 1, %s4
  %s7 = scalar_select 0, %s6, %s4
  // Predicated region
  $region2: #{lstm_encoder_forward.1} parent=0 // pred_check
    _
  $region3: #{lstm_encoder_forward.1} parent=0 // pred_check_branch
    %9 = sbr.rel (0) target = $region5
  $region4: #{lstm_encoder_forward.1} parent=0 // pred_region
    _
  $region5: #{lstm_encoder_forward.1} parent=0 // pred_fallthru
    _
  // Predicated region
  $region6: #{lstm_encoder_forward.1} parent=0 // pred_check
    _
  $region7: #{lstm_encoder_forward.1} parent=0 // pred_check_branch
    %11 = sbr.rel (0) target = $region9
  $region8: #{lstm_encoder_forward.1} parent=0 // pred_region
    _
  $region9: #{lstm_encoder_forward.1} parent=0 // pred_fallthru
    _
  // Predicated region
  $region10: #{lstm_encoder_forward.1} parent=0 // pred_check
    _
  $region11: #{lstm_encoder_forward.1} parent=0 // pred_check_branch
    %13 = sbr.rel (0) target = $region13
  $region12: #{lstm_encoder_forward.1} parent=0 // pred_region
    _
  $region13: #{lstm_encoder_forward.1} parent=0 // pred_fallthru
    _
  %v14 = vld [vmem:[%s2] sm:$0xff]
  %v15 = vld [vmem:[%s2 + $0x8] sm:$0xff]
  %v16 = vld [vmem:[%s2 + $0x10] sm:$0xff]
  %v17 = vld [vmem:[%s2 + $0x18] sm:$0xff]
  %v18 = vld [vmem:[%s2 + $0x20] sm:$0xff]
  %v19 = vld [vmem:[%s2 + $0x28] sm:$0xff]
  %v20 = vld [vmem:[%s2 + $0x30] sm:$0xff]
  %v21 = vld [vmem:[%s2 + $0x38] sm:$0xff]
  %v22 = vld [vmem:[%s2 + $0x40] sm:$0xff]
  %v23 = vld [vmem:[%s2 + $0x48] sm:$0xff]
  %v24 = vld [vmem:[%s2 + $0x50] sm:$0xff]
  %v25 = vld [vmem:[%s2 + $0x58] sm:$0xff]
  %v26 = vld [vmem:[%s2 + $0x60] sm:$0xff]
  %v27 = vld [vmem:[%s2 + $0x68] sm:$0xff]
  %v28 = vld [vmem:[%s1] sm:$0x3]
  %v29 = vld [vmem:[%s1 + $0x2] sm:$0x3]
  %v30 = vlaneseq
  %v31 = vand.u32 %v30, 127
  %vm32 = vcmp.ge.s32.totalorder %v31, 64
  %vm33 = vcmp.lt.s32.totalorder %v31, 96
  %vm34 = vmand %vm32, %vm33
  %v35 = vld [vmem:[%s0] sm:$0xff]
  %v36 = vld [vmem:[%s0 + $0x8] sm:$0xff]
  %vm37 = vcmask 261120
  %v39 = vsel %vm37, %v35, 0
  %v42 = vsel %vm37, %v36, 0
  %44 = vmatpush.msra.mxu0 0.0
  %45 = vmatpush.msra.mxu0 0.0
  %46 = vmatpush.msra.mxu0 0.0
  %47 = vmatpush.msra.mxu0 0.0
  %48 = vmatpush.msra.mxu0 0.0
  %49 = vmatpush.msra.mxu0 0.0
  %50 = vmatpush.msra.mxu0 0.0
  %51 = vmatpush.msra.mxu0 0.0
  %52 = vmatpush.msra.mxu0 0.0
  %53 = vmatpush.msra.mxu0 0.0
  %54 = vmatpush.msra.mxu0 0.0
  %55 = vmatpush.msra.mxu0 0.0
  %56 = vmatpush.msra.mxu0 %v17
  %57 = vmatpush.msra.mxu0 %v16
  %58 = vmatpush.msra.mxu0 %v15
  %59 = vmatpush.msra.mxu0 %v14
  %60 = vmatmul.f32.gmra.mxu0 %v39
  %v61 = vpop.f32.mrf.mxu0
  %v62 = vadd.f32 0.0, %v61
  %63 = vmatmul.f32.gmra.mxu0 %v42
  %v64 = vpop.f32.mrf.mxu0
  %v65 = vadd.f32 0.0, %v64
  %66 = vdwg.mxu0
  %v68 = vsel %vm37, %v28, 0
  %70 = vmatpush.msra.mxu0 0.0
  %71 = vmatpush.msra.mxu0 0.0
  %72 = vmatpush.msra.mxu0 0.0
  %73 = vmatpush.msra.mxu0 0.0
  %74 = vmatpush.msra.mxu0 0.0
  %75 = vmatpush.msra.mxu0 0.0
  %76 = vmatpush.msra.mxu0 0.0
  %77 = vmatpush.msra.mxu0 0.0
  %78 = vmatpush.msra.mxu0 0.0
  %79 = vmatpush.msra.mxu0 0.0
  %80 = vmatpush.msra.mxu0 0.0
  %81 = vmatpush.msra.mxu0 0.0
  %82 = vmatpush.msra.mxu0 %v21
  %83 = vmatpush.msra.mxu0 %v20
  %84 = vmatpush.msra.mxu0 %v19
  %85 = vmatpush.msra.mxu0 %v18
  %86 = vmatmul.f32.gmra.mxu0 %v68
  %v87 = vpop.f32.mrf.mxu0
  %v88 = vadd.f32 0.0, %v87
  %89 = vdwg.mxu0
  %v90 = vadd.f32 %v62, %v88
  %v91 = vmul.f32 %v90, 0.5
  %v92 = vsel %vm34, %v90, %v91
  %v93 = vtanh.pop %v92
  %v94 = vmul.f32 %v93, 0.5
  %v95 = vadd.f32 %v94, 0.5
  %v96 = vsel %vm34, %v93, %v95
  %98 = vrot.lane.b32.xlu0 %v29, 32
  %v99 = vpop.permute.xlu0 %98
  %v101 = vmul.f32 %v96, %v99
  %103 = vrot.lane.b32.xlu0 %v96, 64
  %v104 = vpop.permute.xlu0 %103
  %v106 = vmul.f32 %v96, %v104
  %108 = vrot.lane.b32.xlu0 %v106, 32
  %v109 = vpop.permute.xlu0 %108
  %v111 = vadd.f32 %v101, %v109
  %v112 = vtanh.pop %v111
  %114 = vrot.lane.b32.xlu0 %v112, 64
  %v115 = vpop.permute.xlu0 %114
  %v117 = vmul.f32 %v96, %v115
  %119 = vrot.lane.b32.xlu0 %v117, 32
  %v120 = vpop.permute.xlu0 %119
  %vm122 = vcmask 254976
  %123 = vst.msk [vmem:[#allocation2] sm:$0x3] %vm122, %v120
  %v124 = vsel %vm37, %v120, 0
  %126 = vmatpush.msra.mxu0 0.0
  %127 = vmatpush.msra.mxu0 0.0
  %128 = vmatpush.msra.mxu0 0.0
  %129 = vmatpush.msra.mxu0 0.0
  %130 = vmatpush.msra.mxu0 0.0
  %131 = vmatpush.msra.mxu0 0.0
  %132 = vmatpush.msra.mxu0 0.0
  %133 = vmatpush.msra.mxu0 0.0
  %134 = vmatpush.msra.mxu0 0.0
  %135 = vmatpush.msra.mxu0 0.0
  %136 = vmatpush.msra.mxu0 0.0
  %137 = vmatpush.msra.mxu0 0.0
  %138 = vmatpush.msra.mxu0 %v21
  %139 = vmatpush.msra.mxu0 %v20
  %140 = vmatpush.msra.mxu0 %v19
  %141 = vmatpush.msra.mxu0 %v18
  %142 = vmatmul.f32.gmra.mxu0 %v124
  %v143 = vpop.f32.mrf.mxu0
  %v144 = vadd.f32 0.0, %v143
  %145 = vdwg.mxu0
  %v147 = vrot.slane %v144, 6
  %v149 = vadd.f32 %v62, %v147
  %v150 = vmul.f32 %v149, 0.5
  %v151 = vsel %vm34, %v149, %v150
  %v152 = vtanh.pop %v151
  %v153 = vmul.f32 %v152, 0.5
  %v154 = vadd.f32 %v153, 0.5
  %v155 = vsel %vm34, %v152, %v154
  %v157 = vrot.slane %v111, 6
  %v159 = vmul.f32 %v155, %v157
  %161 = vrot.lane.b32.xlu0 %v155, 64
  %v162 = vpop.permute.xlu0 %161
  %v164 = vmul.f32 %v155, %v162
  %166 = vrot.lane.b32.xlu0 %v164, 32
  %v167 = vpop.permute.xlu0 %166
  %v169 = vadd.f32 %v159, %v167
  %v170 = vtanh.pop %v169
  %172 = vrot.lane.b32.xlu0 %v170, 64
  %v173 = vpop.permute.xlu0 %172
  %v175 = vmul.f32 %v155, %v173
  %177 = vrot.lane.b32.xlu0 %v175, 32
  %v178 = vpop.permute.xlu0 %177
  %vm180 = vcmask 257026
  %181 = vst.msk [vmem:[#allocation2] sm:$0xc] %vm180, %v178
  %v182 = vrot.slane %v175, 2
  %183 = vrot.lane.b32.xlu0 %v182, 32
  %v184 = vpop.permute.xlu0 %183
  %v185 = vsel %vm37, %v184, 0
  %187 = vmatpush.msra.mxu0 0.0
  %188 = vmatpush.msra.mxu0 0.0
  %189 = vmatpush.msra.mxu0 0.0
  %190 = vmatpush.msra.mxu0 0.0
  %191 = vmatpush.msra.mxu0 0.0
  %192 = vmatpush.msra.mxu0 0.0
  %193 = vmatpush.msra.mxu0 0.0
  %194 = vmatpush.msra.mxu0 0.0
  %195 = vmatpush.msra.mxu0 0.0
  %196 = vmatpush.msra.mxu0 0.0
  %197 = vmatpush.msra.mxu0 0.0
  %198 = vmatpush.msra.mxu0 0.0
  %199 = vmatpush.msra.mxu0 %v21
  %200 = vmatpush.msra.mxu0 %v20
  %201 = vmatpush.msra.mxu0 %v19
  %202 = vmatpush.msra.mxu0 %v18
  %203 = vmatmul.f32.gmra.mxu0 %v185
  %v204 = vpop.f32.mrf.mxu0
  %v205 = vadd.f32 0.0, %v204
  %206 = vdwg.mxu0
  %v208 = vrot.slane %v205, 4
  %v210 = vadd.f32 %v62, %v208
  %v211 = vmul.f32 %v210, 0.5
  %v212 = vsel %vm34, %v210, %v211
  %v213 = vtanh.pop %v212
  %v214 = vmul.f32 %v213, 0.5
  %v215 = vadd.f32 %v214, 0.5
  %v216 = vsel %vm34, %v213, %v215
  %v218 = vrot.slane %v169, 6
  %v220 = vmul.f32 %v216, %v218
  %222 = vrot.lane.b32.xlu0 %v216, 64
  %v223 = vpop.permute.xlu0 %222
  %v225 = vmul.f32 %v216, %v223
  %227 = vrot.lane.b32.xlu0 %v225, 32
  %v228 = vpop.permute.xlu0 %227
  %v230 = vadd.f32 %v220, %v228
  %v231 = vtanh.pop %v230
  %233 = vrot.lane.b32.xlu0 %v231, 64
  %v234 = vpop.permute.xlu0 %233
  %v236 = vmul.f32 %v216, %v234
  %238 = vrot.lane.b32.xlu0 %v236, 32
  %v239 = vpop.permute.xlu0 %238
  %vm241 = vcmask 259076
  %242 = vst.msk [vmem:[#allocation2] sm:$0x30] %vm241, %v239
  %v243 = vrot.slane %v236, 4
  %244 = vrot.lane.b32.xlu0 %v243, 32
  %v245 = vpop.permute.xlu0 %244
  %v246 = vsel %vm37, %v245, 0
  %248 = vmatpush.msra.mxu0 0.0
  %249 = vmatpush.msra.mxu0 0.0
  %250 = vmatpush.msra.mxu0 0.0
  %251 = vmatpush.msra.mxu0 0.0
  %252 = vmatpush.msra.mxu0 0.0
  %253 = vmatpush.msra.mxu0 0.0
  %254 = vmatpush.msra.mxu0 0.0
  %255 = vmatpush.msra.mxu0 0.0
  %256 = vmatpush.msra.mxu0 0.0
  %257 = vmatpush.msra.mxu0 0.0
  %258 = vmatpush.msra.mxu0 0.0
  %259 = vmatpush.msra.mxu0 0.0
  %260 = vmatpush.msra.mxu0 %v21
  %261 = vmatpush.msra.mxu0 %v20
  %262 = vmatpush.msra.mxu0 %v19
  %263 = vmatpush.msra.mxu0 %v18
  %264 = vmatmul.f32.gmra.mxu0 %v246
  %v265 = vpop.f32.mrf.mxu0
  %v266 = vadd.f32 0.0, %v265
  %267 = vdwg.mxu0
  %v269 = vrot.slane %v266, 2
  %v271 = vadd.f32 %v62, %v269
  %v272 = vmul.f32 %v271, 0.5
  %v273 = vsel %vm34, %v271, %v272
  %v274 = vtanh.pop %v273
  %v275 = vmul.f32 %v274, 0.5
  %v276 = vadd.f32 %v275, 0.5
  %v277 = vsel %vm34, %v274, %v276
  %v279 = vrot.slane %v230, 6
  %v281 = vmul.f32 %v277, %v279
  %283 = vrot.lane.b32.xlu0 %v277, 64
  %v284 = vpop.permute.xlu0 %283
  %v286 = vmul.f32 %v277, %v284
  %288 = vrot.lane.b32.xlu0 %v286, 32
  %v289 = vpop.permute.xlu0 %288
  %v291 = vadd.f32 %v281, %v289
  %v292 = vtanh.pop %v291
  %294 = vrot.lane.b32.xlu0 %v292, 64
  %v295 = vpop.permute.xlu0 %294
  %v297 = vmul.f32 %v277, %v295
  %299 = vrot.lane.b32.xlu0 %v297, 32
  %v300 = vpop.permute.xlu0 %299
  %vm302 = vcmask 261126
  %303 = vst.msk [vmem:[#allocation2] sm:$0xc0] %vm302, %v300
  %v304 = vrot.slane %v297, 6
  %305 = vrot.lane.b32.xlu0 %v304, 32
  %v306 = vpop.permute.xlu0 %305
  %v307 = vsel %vm37, %v306, 0
  %309 = vmatpush.msra.mxu0 0.0
  %310 = vmatpush.msra.mxu0 0.0
  %311 = vmatpush.msra.mxu0 0.0
  %312 = vmatpush.msra.mxu0 0.0
  %313 = vmatpush.msra.mxu0 0.0
  %314 = vmatpush.msra.mxu0 0.0
  %315 = vmatpush.msra.mxu0 0.0
  %316 = vmatpush.msra.mxu0 0.0
  %317 = vmatpush.msra.mxu0 0.0
  %318 = vmatpush.msra.mxu0 0.0
  %319 = vmatpush.msra.mxu0 0.0
  %320 = vmatpush.msra.mxu0 0.0
  %321 = vmatpush.msra.mxu0 %v21
  %322 = vmatpush.msra.mxu0 %v20
  %323 = vmatpush.msra.mxu0 %v19
  %324 = vmatpush.msra.mxu0 %v18
  %325 = vmatmul.f32.gmra.mxu0 %v307
  %v326 = vpop.f32.mrf.mxu0
  %v327 = vadd.f32 0.0, %v326
  %328 = vdwg.mxu0
  %v329 = vadd.f32 %v65, %v327
  %v330 = vmul.f32 %v329, 0.5
  %v331 = vsel %vm34, %v329, %v330
  %v332 = vtanh.pop %v331
  %v333 = vmul.f32 %v332, 0.5
  %v334 = vadd.f32 %v333, 0.5
  %v335 = vsel %vm34, %v332, %v334
  %v337 = vrot.slane %v291, 6
  %v339 = vmul.f32 %v335, %v337
  %341 = vrot.lane.b32.xlu0 %v335, 64
  %v342 = vpop.permute.xlu0 %341
  %v344 = vmul.f32 %v335, %v342
  %346 = vrot.lane.b32.xlu0 %v344, 32
  %v347 = vpop.permute.xlu0 %346
  %v349 = vadd.f32 %v339, %v347
  %v350 = vtanh.pop %v349
  %352 = vrot.lane.b32.xlu0 %v350, 64
  %v353 = vpop.permute.xlu0 %352
  %v355 = vmul.f32 %v335, %v353
  %357 = vrot.lane.b32.xlu0 %v355, 32
  %v358 = vpop.permute.xlu0 %357
  %360 = vst.msk [vmem:[#allocation2 + $0x8] sm:$0x3] %vm122, %v358
  %v361 = vsel %vm37, %v358, 0
  %363 = vmatpush.msra.mxu0 0.0
  %364 = vmatpush.msra.mxu0 0.0
  %365 = vmatpush.msra.mxu0 0.0
  %366 = vmatpush.msra.mxu0 0.0
  %367 = vmatpush.msra.mxu0 0.0
  %368 = vmatpush.msra.mxu0 0.0
  %369 = vmatpush.msra.mxu0 0.0
  %370 = vmatpush.msra.mxu0 0.0
  %371 = vmatpush.msra.mxu0 0.0
  %372 = vmatpush.msra.mxu0 0.0
  %373 = vmatpush.msra.mxu0 0.0
  %374 = vmatpush.msra.mxu0 0.0
  %375 = vmatpush.msra.mxu0 %v21
  %376 = vmatpush.msra.mxu0 %v20
  %377 = vmatpush.msra.mxu0 %v19
  %378 = vmatpush.msra.mxu0 %v18
  %379 = vmatmul.f32.gmra.mxu0 %v361
  %v380 = vpop.f32.mrf.mxu0
  %v381 = vadd.f32 0.0, %v380
  %382 = vdwg.mxu0
  %v384 = vrot.slane %v381, 6
  %v386 = vadd.f32 %v65, %v384
  %v387 = vmul.f32 %v386, 0.5
  %v388 = vsel %vm34, %v386, %v387
  %v389 = vtanh.pop %v388
  %v390 = vmul.f32 %v389, 0.5
  %v391 = vadd.f32 %v390, 0.5
  %v392 = vsel %vm34, %v389, %v391
  %v394 = vrot.slane %v349, 6
  %v396 = vmul.f32 %v392, %v394
  %398 = vrot.lane.b32.xlu0 %v392, 64
  %v399 = vpop.permute.xlu0 %398
  %v401 = vmul.f32 %v392, %v399
  %403 = vrot.lane.b32.xlu0 %v401, 32
  %v404 = vpop.permute.xlu0 %403
  %v406 = vadd.f32 %v396, %v404
  %v407 = vtanh.pop %v406
  %409 = vrot.lane.b32.xlu0 %v407, 64
  %v410 = vpop.permute.xlu0 %409
  %v412 = vmul.f32 %v392, %v410
  %414 = vrot.lane.b32.xlu0 %v412, 32
  %v415 = vpop.permute.xlu0 %414
  %417 = vst.msk [vmem:[#allocation2 + $0x8] sm:$0xc] %vm180, %v415
  %v418 = vrot.slane %v412, 2
  %419 = vrot.lane.b32.xlu0 %v418, 32
  %v420 = vpop.permute.xlu0 %419
  %v421 = vsel %vm37, %v420, 0
  %423 = vmatpush.msra.mxu0 0.0
  %424 = vmatpush.msra.mxu0 0.0
  %425 = vmatpush.msra.mxu0 0.0
  %426 = vmatpush.msra.mxu0 0.0
  %427 = vmatpush.msra.mxu0 0.0
  %428 = vmatpush.msra.mxu0 0.0
  %429 = vmatpush.msra.mxu0 0.0
  %430 = vmatpush.msra.mxu0 0.0
  %431 = vmatpush.msra.mxu0 0.0
  %432 = vmatpush.msra.mxu0 0.0
  %433 = vmatpush.msra.mxu0 0.0
  %434 = vmatpush.msra.mxu0 0.0
  %435 = vmatpush.msra.mxu0 %v21
  %436 = vmatpush.msra.mxu0 %v20
  %437 = vmatpush.msra.mxu0 %v19
  %438 = vmatpush.msra.mxu0 %v18
  %439 = vmatmul.f32.gmra.mxu0 %v421
  %v440 = vpop.f32.mrf.mxu0
  %v441 = vadd.f32 0.0, %v440
  %442 = vdwg.mxu0
  %v444 = vrot.slane %v441, 4
  %v446 = vadd.f32 %v65, %v444
  %v447 = vmul.f32 %v446, 0.5
  %v448 = vsel %vm34, %v446, %v447
  %v449 = vtanh.pop %v448
  %v450 = vmul.f32 %v449, 0.5
  %v451 = vadd.f32 %v450, 0.5
  %v452 = vsel %vm34, %v449, %v451
  %v454 = vrot.slane %v406, 6
  %v456 = vmul.f32 %v452, %v454
  %458 = vrot.lane.b32.xlu0 %v452, 64
  %v459 = vpop.permute.xlu0 %458
  %v461 = vmul.f32 %v452, %v459
  %463 = vrot.lane.b32.xlu0 %v461, 32
  %v464 = vpop.permute.xlu0 %463
  %v466 = vadd.f32 %v456, %v464
  %v467 = vtanh.pop %v466
  %469 = vrot.lane.b32.xlu0 %v467, 64
  %v470 = vpop.permute.xlu0 %469
  %v472 = vmul.f32 %v452, %v470
  %474 = vrot.lane.b32.xlu0 %v472, 32
  %v475 = vpop.permute.xlu0 %474
  %477 = vst.msk [vmem:[#allocation2 + $0x8] sm:$0x30] %vm241, %v475
  %v478 = vrot.slane %v472, 4
  %479 = vrot.lane.b32.xlu0 %v478, 32
  %v480 = vpop.permute.xlu0 %479
  %v481 = vsel %vm37, %v480, 0
  %483 = vmatpush.msra.mxu0 0.0
  %484 = vmatpush.msra.mxu0 0.0
  %485 = vmatpush.msra.mxu0 0.0
  %486 = vmatpush.msra.mxu0 0.0
  %487 = vmatpush.msra.mxu0 0.0
  %488 = vmatpush.msra.mxu0 0.0
  %489 = vmatpush.msra.mxu0 0.0
  %490 = vmatpush.msra.mxu0 0.0
  %491 = vmatpush.msra.mxu0 0.0
  %492 = vmatpush.msra.mxu0 0.0
  %493 = vmatpush.msra.mxu0 0.0
  %494 = vmatpush.msra.mxu0 0.0
  %495 = vmatpush.msra.mxu0 %v21
  %496 = vmatpush.msra.mxu0 %v20
  %497 = vmatpush.msra.mxu0 %v19
  %498 = vmatpush.msra.mxu0 %v18
  %499 = vmatmul.f32.gmra.mxu0 %v481
  %v500 = vpop.f32.mrf.mxu0
  %v501 = vadd.f32 0.0, %v500
  %502 = vdwg.mxu0
  %v504 = vrot.slane %v501, 2
  %v506 = vadd.f32 %v65, %v504
  %v507 = vmul.f32 %v506, 0.5
  %v508 = vsel %vm34, %v506, %v507
  %v509 = vtanh.pop %v508
  %v510 = vmul.f32 %v509, 0.5
  %v511 = vadd.f32 %v510, 0.5
  %v512 = vsel %vm34, %v509, %v511
  %v514 = vrot.slane %v466, 6
  %v516 = vmul.f32 %v512, %v514
  %518 = vrot.lane.b32.xlu0 %v512, 64
  %v519 = vpop.permute.xlu0 %518
  %v521 = vmul.f32 %v512, %v519
  %523 = vrot.lane.b32.xlu0 %v521, 32
  %v524 = vpop.permute.xlu0 %523
  %v526 = vadd.f32 %v516, %v524
  %v527 = vtanh.pop %v526
  %529 = vrot.lane.b32.xlu0 %v527, 64
  %v530 = vpop.permute.xlu0 %529
  %v532 = vmul.f32 %v512, %v530
  %534 = vrot.lane.b32.xlu0 %v532, 32
  %v535 = vpop.permute.xlu0 %534
  %537 = vst.msk [vmem:[#allocation2 + $0x8] sm:$0xc0] %vm302, %v535
  %v538 = vld [vmem:[#allocation2] sm:$0xff]
  %v539 = vld [vmem:[#allocation2 + $0x8] sm:$0xff]
  %v541 = vsel %vm37, %v538, 0
  %v544 = vsel %vm37, %v539, 0
  %546 = vmatpush.msra.mxu0 0.0
  %547 = vmatpush.msra.mxu0 0.0
  %548 = vmatpush.msra.mxu0 0.0
  %549 = vmatpush.msra.mxu0 0.0
  %550 = vmatpush.msra.mxu0 0.0
  %551 = vmatpush.msra.mxu0 0.0
  %552 = vmatpush.msra.mxu0 0.0
  %553 = vmatpush.msra.mxu0 0.0
  %554 = vmatpush.msra.mxu0 0.0
  %555 = vmatpush.msra.mxu0 0.0
  %556 = vmatpush.msra.mxu0 0.0
  %557 = vmatpush.msra.mxu0 0.0
  %558 = vmatpush.msra.mxu0 %v25
  %559 = vmatpush.msra.mxu0 %v24
  %560 = vmatpush.msra.mxu0 %v23
  %561 = vmatpush.msra.mxu0 %v22
  %562 = vmatmul.f32.gmra.mxu0 %v541
  %v563 = vpop.f32.mrf.mxu0
  %v564 = vadd.f32 0.0, %v563
  %565 = vmatmul.f32.gmra.mxu0 %v544
  %v566 = vpop.f32.mrf.mxu0
  %v567 = vadd.f32 0.0, %v566
  %568 = vdwg.mxu0
  %v569 = vtanh.pop %v564
  %v570 = vtanh.pop %v567
  %vm571 = vcmask 130048
  %v573 = vsel %vm571, %v569, 0
  %v576 = vsel %vm571, %v570, 0
  %578 = vmatpush.msra.mxu0 0.0
  %579 = vmatpush.msra.mxu0 0.0
  %580 = vmatpush.msra.mxu0 0.0
  %581 = vmatpush.msra.mxu0 0.0
  %582 = vmatpush.msra.mxu0 0.0
  %583 = vmatpush.msra.mxu0 0.0
  %584 = vmatpush.msra.mxu0 0.0
  %585 = vmatpush.msra.mxu0 0.0
  %586 = vmatpush.msra.mxu0 0.0
  %587 = vmatpush.msra.mxu0 0.0
  %588 = vmatpush.msra.mxu0 0.0
  %589 = vmatpush.msra.mxu0 0.0
  %590 = vmatpush.msra.mxu0 0.0
  %591 = vmatpush.msra.mxu0 0.0
  %592 = vmatpush.msra.mxu0 %v27
  %593 = vmatpush.msra.mxu0 %v26
  %594 = vmatmul.f32.gmra.mxu0 %v573
  %v595 = vpop.f32.mrf.mxu0
  %v596 = vadd.f32 0.0, %v595
  %597 = vmatmul.f32.gmra.mxu0 %v576
  %v598 = vpop.f32.mrf.mxu0
  %v599 = vadd.f32 0.0, %v598
  %600 = vdwg.mxu0
  %v601 = vlaneseq
  %v602 = vshrl.u32 %v601, 7
  %v603 = vadd.s32 %v602, 8
  %vm604 = vcmp.lt.s32.totalorder %v602, 0
  %v605 = vsub.s32 0, %v602
  %v606 = vsel %vm604, %v605, %v602
  %v607 = vshrl.u32 %v606, 1
  %v608 = vand.u32 %v606, 1
  %v609 = vsub.s32 0, %v608
  %v610 = vsel %vm604, %v609, %v608
  %vm611 = vcmp.lt.s32.totalorder %v603, 0
  %v612 = vsub.s32 0, %v603
  %v613 = vsel %vm611, %v612, %v603
  %v614 = vshrl.u32 %v613, 1
  %v615 = vand.u32 %v613, 1
  %v616 = vsub.s32 0, %v615
  %v617 = vsel %vm611, %v616, %v615
  %vm618 = vcmp.ne.s32.totalorder %v610, 0
  %vm619 = vcmp.ne.s32.totalorder %v617, 0
  %vm620 = vcmp.lt.s32.totalorder %v610, 0
  %vm621 = vcmp.lt.s32.totalorder %v617, 0
  %vm622 = vmand %vm620, %vm618
  %vm623 = vmand %vm621, %vm619
  %v624 = vadd.s32 %v610, 2
  %v625 = vadd.s32 %v617, 2
  %v626 = vsel %vm622, %v624, %v610
  %v627 = vsel %vm623, %v625, %v617
  %vm628 = vcmp.eq.s32.totalorder %v626, 0
  %vm629 = vcmp.eq.s32.totalorder %v627, 0
  %vm630 = vcmp.eq.s32.totalorder %v626, 1
  %vm631 = vcmp.eq.s32.totalorder %v627, 1
  %v632 = vsel %vm628, 1, 0
  %v633 = vsel %vm629, 1, 0
  %vm634 = vcmp.eq.s32.totalorder %v632, 1
  %vm635 = vcmp.eq.s32.totalorder %v633, 1
  %v636 = vsel %vm634, %v596, -inf
  %v637 = vsel %vm635, %v599, -inf
  %vm638 = vcmask 31744
  %v639 = vsel %vm638, %v636, -inf
  %v640 = vsel %vm638, %v637, -inf
  %v641 = vmax.f32 %v639, %v640
  %v642 = vrot.slane %v641, 4
  %v643 = vmax.f32 %v641, %v642
  %v644 = vrot.slane %v643, 2
  %v645 = vmax.f32 %v643, %v644
  %v646 = vrot.slane %v645, 1
  %v647 = vmax.f32 %v645, %v646
  %v648 = vsel %vm630, 1, 0
  %v649 = vsel %vm631, 1, 0
  %vm650 = vcmp.eq.s32.totalorder %v648, 1
  %vm651 = vcmp.eq.s32.totalorder %v649, 1
  %v652 = vsel %vm650, %v596, -inf
  %v653 = vsel %vm651, %v599, -inf
  %v654 = vsel %vm638, %v652, -inf
  %v655 = vsel %vm638, %v653, -inf
  %v656 = vmax.f32 %v654, %v655
  %v657 = vrot.slane %v656, 4
  %v658 = vmax.f32 %v656, %v657
  %v659 = vrot.slane %v658, 2
  %v660 = vmax.f32 %v658, %v659
  %v661 = vrot.slane %v660, 1
  %v662 = vmax.f32 %v660, %v661
  %v663 = vsel %vm634, %v647, %v662
  %v664 = vsel %vm635, %v647, %v662
  %v665 = vsub.f32 %v596, %v663
  %v666 = vsub.f32 %v599, %v664
  %v667 = vmul.f32 %v665, 1.442695
  %v668 = vpow.pop %v667
  %v669 = vmul.f32 %v666, 1.442695
  %v670 = vpow.pop %v669
  %v671 = vsel %vm634, %v668, 0.0
  %v672 = vsel %vm635, %v670, 0.0
  %v673 = vsel %vm638, %v671, 0.0
  %v674 = vsel %vm638, %v672, 0.0
  %v675 = vadd.f32 %v673, %v674
  %v676 = vrot.slane %v675, 4
  %v677 = vadd.f32 %v675, %v676
  %v678 = vrot.slane %v677, 2
  %v679 = vadd.f32 %v677, %v678
  %v680 = vrot.slane %v679, 1
  %v681 = vadd.f32 %v679, %v680
  %v682 = vsel %vm650, %v668, 0.0
  %v683 = vsel %vm651, %v670, 0.0
  %v684 = vsel %vm638, %v682, 0.0
  %v685 = vsel %vm638, %v683, 0.0
  %v686 = vadd.f32 %v684, %v685
  %v687 = vrot.slane %v686, 4
  %v688 = vadd.f32 %v686, %v687
  %v689 = vrot.slane %v688, 2
  %v690 = vadd.f32 %v688, %v689
  %v691 = vrot.slane %v690, 1
  %v692 = vadd.f32 %v690, %v691
  %v693 = vsel %vm634, %v681, %v692
  %v694 = vsel %vm635, %v681, %v692
  %v695 = vrcp.pop %v693
  %v696 = vmul.f32 %v693, %v695
  %v697 = vsub.f32 1.0, %v696
  %v698 = vmul.f32 %v695, %v697
  %v699 = vadd.f32 %v695, %v698
  %vm700 = vweird.f32 %v693
  %vm701 = vweird.f32 %v695
  %vm702 = vmor %vm700, %vm701
  %v703 = vsel %vm702, %v695, %v699
  %v704 = vand.u32 2147483647, %v693
  %vm705 = vcmp.eq.f32.partialorder %v704, 8.507059e+37
  %v706 = vand.u32 %v693, 2147483648
  %v707 = vor.u32 1.1754944e-38, %v706
  %v708 = vsel %vm705, %v707, %v703
  %v709 = vmul.f32 %v668, %v708
  %v710 = vrcp.pop %v694
  %v711 = vmul.f32 %v694, %v710
  %v712 = vsub.f32 1.0, %v711
  %v713 = vmul.f32 %v710, %v712
  %v714 = vadd.f32 %v710, %v713
  %vm715 = vweird.f32 %v694
  %vm716 = vweird.f32 %v710
  %vm717 = vmor %vm715, %vm716
  %v718 = vsel %vm717, %v710, %v714
  %v719 = vand.u32 2147483647, %v694
  %vm720 = vcmp.eq.f32.partialorder %v719, 8.507059e+37
  %v721 = vand.u32 %v694, 2147483648
  %v722 = vor.u32 1.1754944e-38, %v721
  %v723 = vsel %vm720, %v722, %v718
  %v724 = vmul.f32 %v670, %v723
  %v725 = vsel %vm634, %v709, 0.0
  %v726 = vsel %vm635, %v724, 0.0
  %v727 = vsel %vm650, %v709, 0.0
  %v728 = vsel %vm651, %v724, 0.0
  %731 = vrot.lane.b32.xlu0 %v727, 4
  %v732 = vpop.permute.xlu0 %731
  %733 = vrot.lane.b32.xlu0 %v728, 4
  %v734 = vpop.permute.xlu0 %733
  %v737 = vsel %vm638, %v725, %v732
  %v738 = vsel %vm638, %v726, %v734
  %739 = vxpose.xlu0.b32.start [1/16] %v737, 128
  %740 = vxpose.xlu0.b32.cont [2/16] %v738, 128
  %741 = vxpose.xlu0.b32.cont [3/16] 0.0, 128
  %742 = vxpose.xlu0.b32.cont [4/16] 0.0, 128
  %743 = vxpose.xlu0.b32.cont [5/16] 0.0, 128
  %744 = vxpose.xlu0.b32.cont [6/16] 0.0, 128
  %745 = vxpose.xlu0.b32.cont [7/16] 0.0, 128
  %746 = vxpose.xlu0.b32.cont [8/16] 0.0, 128
  %747 = vxpose.xlu0.b32.cont [9/16] 0.0, 128
  %748 = vxpose.xlu0.b32.cont [10/16] 0.0, 128
  %749 = vxpose.xlu0.b32.cont [11/16] 0.0, 128
  %750 = vxpose.xlu0.b32.cont [12/16] 0.0, 128
  %751 = vxpose.xlu0.b32.cont [13/16] 0.0, 128
  %752 = vxpose.xlu0.b32.cont [14/16] 0.0, 128
  %753 = vxpose.xlu0.b32.cont [15/16] 0.0, 128
  %754 = vxpose.xlu0.b32.end [16/16] 0.0, 128
  %v755 = vpop.trf.xlu0
  %v756 = vpop.trf.xlu0
  %v757 = vpop.trf.xlu0
  %v758 = vpop.trf.xlu0
  %v759 = vpop.trf.xlu0
  %v760 = vpop.trf.xlu0
  %v761 = vpop.trf.xlu0
  %v762 = vpop.trf.xlu0
  %v763 = vpop.trf.xlu0
  %v764 = vpop.trf.xlu0
  %v765 = vpop.trf.xlu0
  %v766 = vpop.trf.xlu0
  %v767 = vpop.trf.xlu0
  %v768 = vpop.trf.xlu0
  %v769 = vpop.trf.xlu0
  %v770 = vpop.trf.xlu0
  %v772 = vsel %vm571, %v755, 0
  %774 = vmatpush.msra.mxu0 0.0
  %775 = vmatpush.msra.mxu0 0.0
  %776 = vmatpush.msra.mxu0 0.0
  %777 = vmatpush.msra.mxu0 0.0
  %778 = vmatpush.msra.mxu0 0.0
  %779 = vmatpush.msra.mxu0 0.0
  %780 = vmatpush.msra.mxu0 0.0
  %781 = vmatpush.msra.mxu0 0.0
  %782 = vmatpush.msra.mxu0 0.0
  %783 = vmatpush.msra.mxu0 0.0
  %784 = vmatpush.msra.mxu0 0.0
  %785 = vmatpush.msra.mxu0 0.0
  %786 = vmatpush.msra.mxu0 0.0
  %787 = vmatpush.msra.mxu0 0.0
  %788 = vmatpush.msra.mxu0 %v539
  %789 = vmatpush.msra.mxu0 %v538
  %790 = vmatmul.f32.gmra.mxu0 %v772
  %v791 = vpop.f32.mrf.mxu0
  %v792 = vadd.f32 0.0, %v791
  %793 = vdwg.mxu0
  %794 = vmatpush.msra.mxu0 0.0
  %795 = vmatpush.msra.mxu0 0.0
  %796 = vmatpush.msra.mxu0 0.0
  %797 = vmatpush.msra.mxu0 0.0
  %798 = vmatpush.msra.mxu0 0.0
  %799 = vmatpush.msra.mxu0 0.0
  %800 = vmatpush.msra.mxu0 0.0
  %801 = vmatpush.msra.mxu0 0.0
  %802 = vmatpush.msra.mxu0 0.0
  %803 = vmatpush.msra.mxu0 0.0
  %804 = vmatpush.msra.mxu0 0.0
  %805 = vmatpush.msra.mxu0 0.0
  %806 = vmatpush.msra.mxu0 0.0
  %807 = vmatpush.msra.mxu0 0.0
  %808 = vmatpush.msra.mxu0 %v738
  %809 = vmatpush.msra.mxu0 %v737
  %810 = vmatmul.f32.gmra.mxu0 %v772
  %v811 = vpop.f32.mrf.mxu0
  %v812 = vadd.f32 0.0, %v811
  %813 = vdwg.mxu0
  %vm814 = vcmp.eq.s32.totalorder %v602, %v31
  %v815 = vsel %vm814, 1, 0
  %v816 = vcvt.s32.f32 %v815
  %v817 = vsub.f32 %v812, %v816
  %v818 = vmul.f32 %v817, %v817
  %vm819 = vcmask 64512
  %v820 = vsel %vm819, %v818, 0.0
  %821 = vadd.xlane.f32.xlu0 %v820
  %v822 = vpop.xlane.xlu0 %821
  %v823 = vrot.slane %v822, 4
  %v824 = vadd.f32 %v822, %v823
  %v825 = vrot.slane %v824, 2
  %v826 = vadd.f32 %v824, %v825
  %v827 = vrot.slane %v826, 1
  %v828 = vadd.f32 %v826, %v827
  %s829 = vtos %v828
  %v830 = vstv %s829
  %v831 = vmul.f32 %v830, 0.5
  %832 = vst.msk [vmem:[%s3] sm:$0xff] %vm37, %v792
  %833 = vst.msk [vmem:[%s3 + $0x2] sm:$0xc0] %vm302, %v535
  %835 = vrot.lane.b32.xlu0 %v526, 96
  %v836 = vpop.permute.xlu0 %835
  %838 = vst.msk [vmem:[%s3 + $0x4] sm:$0xc0] %vm302, %v836
  %vm839 = vcmask 253952
  %840 = vst.msk [vmem:[%s3 + $0xc] sm:$0x1] %vm839, %v831
  // Predicated region
  $region14: #{lstm_encoder_forward.1} parent=0 // pred_check
    _
  $region15: #{lstm_encoder_forward.1} parent=0 // pred_check_branch
    %842 = sbr.rel (0) target = $region17
  $region16: #{lstm_encoder_forward.1} parent=0 // pred_region
    _
  $region17: #{lstm_encoder_forward.1} parent=0 // pred_fallthru
    _
  // Predicated region
  $region18: #{lstm_encoder_forward.1} parent=0 // pred_check
    _
  $region19: #{lstm_encoder_forward.1} parent=0 // pred_check_branch
    %844 = sbr.rel (0) target = $region21
  $region20: #{lstm_encoder_forward.1} parent=0 // pred_region
    _
  $region21: #{lstm_encoder_forward.1} parent=0 // pred_fallthru
    _

</llo_original>
